<compile_context>
chip_gen: v6e
topology: v6e:2x2x1
jax: 0.10.0
libtpu: 0.0.40
codegen_flags: <defaults>
</compile_context>

<pallas_src>
import functools
import math

import jax
import jax.numpy as jnp
from jax import lax
from jax.experimental import pallas as pl
from jax.experimental.pallas import tpu as pltpu


def _round_up(x: int, m: int) -> int:
    return ((x + m - 1) // m) * m


def _physical_vmem_bytes() -> int:
    """Per-core VMEM capacity; conservative 64 MiB (v7x) fallback."""
    try:
        return int(pltpu.get_tpu_info().vmem_capacity_bytes)
    except Exception:
        return 64 * 1024 * 1024


def _vmem_bytes(tm, tn, tk, Kp, rp, mm_s, out_s) -> int:
    """Estimate of the pipelined working set for one grid step."""
    return (2 * (tm * tk + tn * tk + tn * rp) * mm_s   # x, W, B (double-buffered)
            + 2 * rp * Kp * mm_s                       # A, fully K-resident
            + 2 * tn * 4                               # bias (f32)
            + 2 * tm * tn * out_s                      # output tiles
            + (tm * tn + tm * rp) * 4)                 # f32 accumulators (scratch)


# ----------------------------------------------------------------------------
# Kernel
# ----------------------------------------------------------------------------
def _lora_kernel(x_ref, w_ref, bias_ref, a_ref, b_ref, o_ref, acc_ref, xa_ref,
                 *, scale, tk, reuse_xa):
    """Grid: (M tiles, N tiles, K tiles); K is the reduction (innermost) axis.

    x_ref   : (tm, tk)        activation tile
    w_ref   : (tn, tk)        frozen weight tile, original (out_dim, in_dim) layout
    bias_ref: (1,  tn)  f32   bias tile
    a_ref   : (rp, Kp)        LoRA A, fully VMEM-resident (original (r, in_dim) layout)
    b_ref   : (tn, rp)        LoRA B tile, original (out_dim, r) layout
    o_ref   : (tm, tn)        output tile
    acc_ref : (tm, tn)  f32   base-matmul accumulator (persists across K)
    xa_ref  : (tm, rp)  f32   x @ A.T accumulator
    """
    j = pl.program_id(1)
    k = pl.program_id(2)
    nk = pl.num_programs(2)

    @pl.when(k == 0)
    def _():
        acc_ref[...] = jnp.zeros_like(acc_ref)

    x = x_ref[...]

    # Base path: x (tm, tk) contracted with W (tn, tk) on K -> (tm, tn).
    # W keeps its original (out_dim, in_dim) layout; the MXU consumes the
    # transposed orientation for free.
    acc_ref[...] += lax.dot_general(
        x, w_ref[...], (((1,), (1,)), ((), ())),
        preferred_element_type=jnp.float32)

    # LoRA down-projection xa = x @ A.T.  A lives fully in VMEM; slice the
    # live K chunk.  Start offset is a static multiple of tk (>= 128-aligned).
    k_start = pl.multiple_of(k * tk, tk)

    def _xa_update():
        a_chunk = a_ref[:, pl.ds(k_start, tk)]
        xa_ref[...] += lax.dot_general(
            x, a_chunk, (((1,), (1,)), ((), ())),
            preferred_element_type=jnp.float32)

    if reuse_xa:
        # Accumulate xa over K only on the first N tile and reuse it for all
        # later N tiles of this row block.  Requires the N axis to run in
        # order on one core, i.e. "arbitrary" (NOT "parallel").
        @pl.when((j == 0) & (k == 0))
        def _():
            xa_ref[...] = jnp.zeros_like(xa_ref)

        @pl.when(j == 0)
        def _():
            _xa_update()
    else:
        # Recompute xa for every (i, j); costs ~rp/Np of base FLOPs but lets
        # the N axis be megacore-parallel (important for small M on v7x).
        @pl.when(k == 0)
        def _():
            xa_ref[...] = jnp.zeros_like(xa_ref)

        _xa_update()

    # Epilogue once per (M, N) tile: bias + scaled LoRA up-projection (f32).
    @pl.when(k == nk - 1)
    def _():
        xa = (xa_ref[...] * scale).astype(b_ref.dtype)  # scale the small (tm, rp)
        lora = lax.dot_general(
            xa, b_ref[...], (((1,), (1,)), ((), ())),
            preferred_element_type=jnp.float32)
        o_ref[...] = (acc_ref[...] + bias_ref[...] + lora).astype(o_ref.dtype)


# ----------------------------------------------------------------------------
# Parameter preparation (run ONCE, outside the hot path)
# ----------------------------------------------------------------------------
def prepare_lora_params(W, b, A, B, alpha, r, *,
                        param_dtype=jnp.bfloat16,
                        tm_target=512, tn_target=512, tk_target=1024):
    """Pad + cast the frozen base weight, bias and LoRA A/B once; pick tiles.

    W: (out_dim, in_dim); b: (out_dim,) or None; A: (r, in_dim); B: (out_dim, r).
    param_dtype=bf16 by default: doubles MXU rate and halves weight HBM traffic
    on v5e/v6e/v7x; accumulation and the epilogue stay f32.
    """
    out_dim, in_dim = W.shape
    assert A.shape == (r, in_dim) and B.shape == (out_dim, r)
    if b is None:
        b = jnp.zeros((out_dim,), dtype=jnp.float32)

    mm_dtype = jnp.dtype(param_dtype)
    mm_s = mm_dtype.itemsize
    out_s = 4  # budget for f32 output tiles (worst case)

    vmem_budget = int(0.70 * _physical_vmem_bytes())

    rp = _round_up(max(r, 1), 128)
    tn = min(tn_target, _round_up(out_dim, 128))
    tm = min(tm_target, 512)  # budget-time tm assumption; forward only shrinks

    def fits(tk_, kp_):
        return _vmem_bytes(tm, tn, tk_, kp_, rp, mm_s, out_s) <= vmem_budget

    tk_full = _round_up(in_dim, 128)
    if fits(tk_full, tk_full):
        # K fully resident: the K grid axis collapses to a single step
        # (no accumulator revisits).  Common on v5e/v6e; v7x only if it fits
        # under its 64 MiB VMEM.
        tk = tk_full
    else:
        tk = min(tk_target, tk_full)
        while tk > 128 and not fits(tk, _round_up(in_dim, tk)):
            tk = max(128, _round_up(tk // 2, 128))
        # TODO(synk): for extreme in_dim where even A-residency alone exceeds
        # the budget, fall back to a K-tiled A BlockSpec.

    Kp = _round_up(in_dim, tk)
    Np = _round_up(out_dim, tn)

    def pad2(arr, rows, cols):
        pr, pc = rows - arr.shape[0], cols - arr.shape[1]
        if pr or pc:
            arr = jnp.pad(arr, ((0, pr), (0, pc)))
        return arr

    Wp = pad2(W, Np, Kp).astype(mm_dtype)
    Ap = pad2(A, rp, Kp).astype(mm_dtype)
    Bp = pad2(B, Np, rp).astype(mm_dtype)
    bp = jnp.pad(b.astype(jnp.float32), (0, Np - out_dim)).reshape(1, Np)

    return dict(
        Wp=Wp, bp=bp, Ap=Ap, Bp=Bp,
        in_dim=in_dim, out_dim=out_dim,
        Kp=Kp, Np=Np, rp=rp, tn=tn, tk=tk, tm_max=tm,
        scale=float(alpha) / float(r),
        mm_dtype=mm_dtype,
        vmem_cap=int(0.75 * _physical_vmem_bytes()),
    )


# ----------------------------------------------------------------------------
# Forward
# ----------------------------------------------------------------------------
def lora_linear_forward(x, params, *, tm=None, buffer_count=None):
    """x: (..., in_dim) activations.  params: from prepare_lora_params."""
    in_dim = params["in_dim"]
    out_dim = params["out_dim"]
    Kp, Np, rp = params["Kp"], params["Np"], params["rp"]
    tn, tk = params["tn"], params["tk"]
    scale = params["scale"]
    mm_dtype = params["mm_dtype"]

    lead_shape = x.shape[:-1]
    assert x.shape[-1] == in_dim
    M = int(math.prod(lead_shape))
    out_dtype = x.dtype
    out_s = jnp.dtype(out_dtype).itemsize
    mm_s = mm_dtype.itemsize

    if tm is None:
        tm = params["tm_max"]
    tm = min(tm, params["tm_max"], _round_up(M, 8))
    Mp = _round_up(M, tm)

    # Pad/cast x only when needed (zeros are exact for all products/sums).
    x2d = x.reshape(M, in_dim)
    if Mp != M or Kp != in_dim:
        x2d = jnp.pad(x2d, ((0, Mp - M), (0, Kp - in_dim)))
    xp = x2d.astype(mm_dtype) if x2d.dtype != mm_dtype else x2d

    n_m = Mp // tm
    n_n = Np // tn
    n_k = Kp // tk
    grid = (n_m, n_n, n_k)

    # xa-reuse across N is only worth it (and only safe) when N is sequential
    # on one core; with a single M block we prefer N-parallel for 2-TC chips.
    reuse_xa = n_m >= 2
    if reuse_xa:
        dims = ("parallel", "arbitrary", "arbitrary")
    else:
        dims = ("parallel", "parallel", "arbitrary")

    # Realistic traffic estimate: W/B/bias re-streamed per M block, x per N
    # block; A is VMEM-resident (fetched once).
    flops = 2 * M * (in_dim * out_dim + in_dim * params.get("r", rp)
                     if False else 0)  # placeholder, replaced below
    r_eff = params["Bp"].shape[1]
    flops = 2 * M * (in_dim * out_dim + in_dim * r_eff + r_eff * out_dim)
    bytes_accessed = (n_n * Mp * Kp * mm_s          # x (re-streamed per N block)
                      + n_m * Np * Kp * mm_s        # W (re-streamed per M block)
                      + n_m * Np * 4                # bias
                      + rp * Kp * mm_s              # A (resident)
                      + n_m * Np * rp * mm_s        # B (re-streamed per M block)
                      + Mp * Np * out_s)            # out

    vmem_needed = _vmem_bytes(tm, tn, tk, Kp, rp, mm_s, out_s)
    vmem_limit = max(16 * 1024 * 1024, int(1.25 * vmem_needed))
    vmem_limit = min(vmem_limit, params["vmem_cap"])

    def _spec(shape, index_map, buffered):
        if buffered and buffer_count is not None:
            return pl.BlockSpec(shape, index_map,
                                pipeline_mode=pl.Buffered(buffer_count))
        return pl.BlockSpec(shape, index_map)

    kernel = functools.partial(_lora_kernel, scale=scale, tk=tk,
                               reuse_xa=reuse_xa)

    out2d = pl.pallas_call(
        kernel,
        out_shape=jax.ShapeDtypeStruct((Mp, Np), out_dtype),
        grid_spec=pltpu.PrefetchScalarGridSpec(
            num_scalar_prefetch=0,
            grid=grid,
            in_specs=[
                _spec((tm, tk), lambda i, j, k: (i, k), True),    # x
                _spec((tn, tk), lambda i, j, k: (j, k), True),    # W (out,in)
                pl.BlockSpec((1, tn), lambda i, j, k: (0, j)),    # bias
                pl.BlockSpec((rp, Kp), lambda i, j, k: (0, 0)),   # A, K-resident
                pl.BlockSpec((tn, rp), lambda i, j, k: (j, 0)),   # B (out,r)
            ],
            out_specs=pl.BlockSpec((tm, tn), lambda i, j, k: (i, j)),
            scratch_shapes=[
                pltpu.VMEM((tm, tn), jnp.float32),   # base accumulator
                pltpu.VMEM((tm, rp), jnp.float32),   # xa = x @ A.T accumulator
            ],
        ),
        compiler_params=pltpu.CompilerParams(
            dimension_semantics=dims,
            vmem_limit_bytes=vmem_limit,
        ),
        cost_estimate=pl.CostEstimate(
            flops=flops, transcendentals=0, bytes_accessed=bytes_accessed),
    )(xp, params["Wp"], params["bp"], params["Ap"], params["Bp"])

    return out2d[:M, :out_dim].reshape(*lead_shape, out_dim)


# ----------------------------------------------------------------------------
# Demo / correctness check
# ----------------------------------------------------------------------------
if __name__ == "__main__":
    # Small shapes consistent with a LoRA-wrapped nn.Linear(in_dim, out_dim).
    batch, seq, in_dim, out_dim, r, alpha = 2, 8, 32, 64, 4, 8

    key = jax.random.PRNGKey(0)
    kx, kw, kb, ka, kbb = jax.random.split(key, 5)

    x = jax.random.normal(kx, (batch, seq, in_dim), dtype=jnp.float32)

    # Frozen base linear params (deterministic synthetic init).
    W = jax.random.normal(kw, (out_dim, in_dim), dtype=jnp.float32) * (1.0 / jnp.sqrt(in_dim))
    b = jax.random.normal(kb, (out_dim,), dtype=jnp.float32) * 0.1

    # LoRA params. A ~ kaiming_normal_(nonlinearity='linear') -> N(0, 1/fan_in).
    A = jax.random.normal(ka, (r, in_dim), dtype=jnp.float32) * (1.0 / jnp.sqrt(in_dim))
    # Module inits B to zeros; use a small nonzero B so the LoRA path is exercised.
    B = jax.random.normal(kbb, (out_dim, r), dtype=jnp.float32) * 0.02

    # Pure-JAX reference.
    ref = x @ W.T + b + (x @ A.T @ B.T) * (alpha / r)

    # f32 params: strict correctness check.
    params_f32 = prepare_lora_params(W, b, A, B, alpha, r, param_dtype=jnp.float32)
    y = lora_linear_forward(x, params_f32)
    y = jax.block_until_ready(y)
    assert y.shape == (batch, seq, out_dim)
    assert jnp.allclose(y, ref, atol=1e-5, rtol=1e-5), "f32 mismatch vs reference"

    # Default bf16 MXU operands (f32 accumulation / epilogue): looser tolerance.
    params_bf16 = prepare_lora_params(W, b, A, B, alpha, r)  # bf16 default
    y_bf16 = lora_linear_forward(x, params_bf16)
    y_bf16 = jax.block_until_ready(y_bf16)
    assert jnp.allclose(y_bf16, ref, atol=5e-2, rtol=5e-2), "bf16 mismatch vs reference"

    print("KERNEL_OK")
</pallas_src>

<mosaic_0001>
module attributes {stable_mosaic.version = 11 : i64} {
  func.func @_lora_kernel(%arg0: i32, %arg1: i32, %arg2: i32, %arg3: memref<16x128xf32, #tpu.memory_space<vmem>>, %arg4: memref<128x128xf32, #tpu.memory_space<vmem>>, %arg5: memref<1x128xf32, #tpu.memory_space<vmem>>, %arg6: memref<128x128xf32, #tpu.memory_space<vmem>>, %arg7: memref<128x128xf32, #tpu.memory_space<vmem>>, %arg8: memref<16x128xf32, #tpu.memory_space<vmem>>, %arg9: memref<16x128xf32, #tpu.memory_space<vmem>>, %arg10: memref<16x128xf32, #tpu.memory_space<vmem>>) attributes {dimension_semantics = [#tpu.dimension_semantics<parallel>, #tpu.dimension_semantics<parallel>, #tpu.dimension_semantics<arbitrary>], iteration_bounds = array<i64: 1, 1, 1>, scalar_prefetch = 0 : i64, scratch_operands = 2 : i64, tpu.core_type = #tpu.core_type<tc>, window_params = [{transform_indices = @transform_0, window_bounds = array<i64: 16, 128>}, {transform_indices = @transform_1, window_bounds = array<i64: 128, 128>}, {transform_indices = @transform_2, window_bounds = array<i64: 1, 128>}, {pipeline_mode = #tpu.pipeline_mode<synchronous>, transform_indices = @transform_3, window_bounds = array<i64: 128, 128>}, {transform_indices = @transform_4, window_bounds = array<i64: 128, 128>}, {transform_indices = @transform_5, window_bounds = array<i64: 16, 128>}]} {
    %c0_i32 = arith.constant 0 : i32
    %0 = arith.cmpi eq, %arg2, %c0_i32 : i32
    %1 = arith.extui %0 : i1 to i32
    %c0_i32_0 = arith.constant 0 : i32
    %2 = arith.cmpi ne, %1, %c0_i32_0 : i32
    scf.if %2 {
      %cst_18 = arith.constant 0.000000e+00 : f32
      %23 = vector.broadcast %cst_18 : f32 to vector<16x128xf32>
      %c0_19 = arith.constant 0 : index
      %c0_20 = arith.constant 0 : index
      %24 = vector.load %arg9[%c0_19, %c0_20] : memref<16x128xf32, #tpu.memory_space<vmem>>, vector<16x128xf32>
      tpu.vector_store %arg9[%c0_19, %c0_20], %23 {strides = array<i32>} : memref<16x128xf32, #tpu.memory_space<vmem>>, vector<16x128xf32>,
    } else {
    }
    %c0 = arith.constant 0 : index
    %c0_1 = arith.constant 0 : index
    %3 = vector.load %arg3[%c0, %c0_1] : memref<16x128xf32, #tpu.memory_space<vmem>>, vector<16x128xf32>
    %c0_2 = arith.constant 0 : index
    %c0_3 = arith.constant 0 : index
    %4 = vector.load %arg9[%c0_2, %c0_3] : memref<16x128xf32, #tpu.memory_space<vmem>>, vector<16x128xf32>
    %c0_4 = arith.constant 0 : index
    %c0_5 = arith.constant 0 : index
    %5 = vector.load %arg4[%c0_4, %c0_5] : memref<128x128xf32, #tpu.memory_space<vmem>>, vector<128x128xf32>
    %cst = arith.constant dense<0.000000e+00> : vector<16x128xf32>
    %6 = tpu.matmul %3, %5, %cst {dimension_numbers = #tpu.dot_dimension_numbers<[1], [1], [0], [0], [0, 0, 1, 0], [], []>} : vector<16x128xf32>, vector<128x128xf32>, vector<16x128xf32> -> vector<16x128xf32>
    %7 = arith.addf %4, %6 : vector<16x128xf32>
    %c0_6 = arith.constant 0 : index
    %c0_7 = arith.constant 0 : index
    %8 = vector.load %arg9[%c0_6, %c0_7] : memref<16x128xf32, #tpu.memory_space<vmem>>, vector<16x128xf32>
    tpu.vector_store %arg9[%c0_6, %c0_7], %7 {strides = array<i32>} : memref<16x128xf32, #tpu.memory_space<vmem>>, vector<16x128xf32>,
    %c128_i32 = arith.constant 128 : i32
    %9 = arith.muli %arg2, %c128_i32 : i32
    %10 = tpu.assume_multiple %9, 128 : i32
    %c0_i32_8 = arith.constant 0 : i32
    %11 = arith.cmpi eq, %arg2, %c0_i32_8 : i32
    %12 = arith.extui %11 : i1 to i32
    %c0_i32_9 = arith.constant 0 : i32
    %13 = arith.cmpi ne, %12, %c0_i32_9 : i32
    scf.if %13 {
      %cst_18 = arith.constant 0.000000e+00 : f32
      %23 = vector.broadcast %cst_18 : f32 to vector<16x128xf32>
      %c0_19 = arith.constant 0 : index
      %c0_20 = arith.constant 0 : index
      %24 = vector.load %arg10[%c0_19, %c0_20] : memref<16x128xf32, #tpu.memory_space<vmem>>, vector<16x128xf32>
      tpu.vector_store %arg10[%c0_19, %c0_20], %23 {strides = array<i32>} : memref<16x128xf32, #tpu.memory_space<vmem>>, vector<16x128xf32>,
    } else {
    }
    %c0_10 = arith.constant 0 : index
    %14 = arith.index_cast %10 : i32 to index
    %15 = vector.load %arg6[%c0_10, %14] : memref<128x128xf32, #tpu.memory_space<vmem>>, vector<128x128xf32>
    %c0_11 = arith.constant 0 : index
    %c0_12 = arith.constant 0 : index
    %16 = vector.load %arg10[%c0_11, %c0_12] : memref<16x128xf32, #tpu.memory_space<vmem>>, vector<16x128xf32>
    %cst_13 = arith.constant dense<0.000000e+00> : vector<16x128xf32>
    %17 = tpu.matmul %3, %15, %cst_13 {dimension_numbers = #tpu.dot_dimension_numbers<[1], [1], [0], [0], [0, 0, 1, 0], [], []>} : vector<16x128xf32>, vector<128x128xf32>, vector<16x128xf32> -> vector<16x128xf32>
    %18 = arith.addf %16, %17 : vector<16x128xf32>
    %c0_14 = arith.constant 0 : index
    %c0_15 = arith.constant 0 : index
    %19 = vector.load %arg10[%c0_14, %c0_15] : memref<16x128xf32, #tpu.memory_space<vmem>>, vector<16x128xf32>
    tpu.vector_store %arg10[%c0_14, %c0_15], %18 {strides = array<i32>} : memref<16x128xf32, #tpu.memory_space<vmem>>, vector<16x128xf32>,
    %c0_i32_16 = arith.constant 0 : i32
    %20 = arith.cmpi eq, %arg2, %c0_i32_16 : i32
    %21 = arith.extui %20 : i1 to i32
    %c0_i32_17 = arith.constant 0 : i32
    %22 = arith.cmpi ne, %21, %c0_i32_17 : i32
    scf.if %22 {
      %c0_18 = arith.constant 0 : index
      %c0_19 = arith.constant 0 : index
      %23 = vector.load %arg10[%c0_18, %c0_19] : memref<16x128xf32, #tpu.memory_space<vmem>>, vector<16x128xf32>
      %cst_20 = arith.constant 2.000000e+00 : f32
      %24 = vector.broadcast %cst_20 : f32 to vector<16x128xf32>
      %25 = arith.mulf %23, %24 : vector<16x128xf32>
      %c0_21 = arith.constant 0 : index
      %c0_22 = arith.constant 0 : index
      %26 = vector.load %arg7[%c0_21, %c0_22] : memref<128x128xf32, #tpu.memory_space<vmem>>, vector<128x128xf32>
      %cst_23 = arith.constant dense<0.000000e+00> : vector<16x128xf32>
      %27 = tpu.matmul %25, %26, %cst_23 {dimension_numbers = #tpu.dot_dimension_numbers<[1], [1], [0], [0], [0, 0, 1, 0], [], []>} : vector<16x128xf32>, vector<128x128xf32>, vector<16x128xf32> -> vector<16x128xf32>
      %c0_24 = arith.constant 0 : index
      %c0_25 = arith.constant 0 : index
      %28 = vector.load %arg9[%c0_24, %c0_25] : memref<16x128xf32, #tpu.memory_space<vmem>>, vector<16x128xf32>
      %c0_26 = arith.constant 0 : index
      %c0_27 = arith.constant 0 : index
      %29 = vector.load %arg5[%c0_26, %c0_27] : memref<1x128xf32, #tpu.memory_space<vmem>>, vector<1x128xf32>
      %30 = vector.broadcast %29 : vector<1x128xf32> to vector<16x128xf32>
      %31 = arith.addf %28, %30 : vector<16x128xf32>
      %32 = arith.addf %31, %27 : vector<16x128xf32>
      %c0_28 = arith.constant 0 : index
      %c0_29 = arith.constant 0 : index
      %33 = vector.load %arg8[%c0_28, %c0_29] : memref<16x128xf32, #tpu.memory_space<vmem>>, vector<16x128xf32>
      tpu.vector_store %arg8[%c0_28, %c0_29], %32 {strides = array<i32>} : memref<16x128xf32, #tpu.memory_space<vmem>>, vector<16x128xf32>,
    } else {
    }
    return
  }
  func.func @transform_0(%arg0: i32, %arg1: i32, %arg2: i32) -> (i32, i32) {
    %c0_i32 = arith.constant 0 : i32
    return %arg0, %arg2 : i32, i32
  }
  func.func @transform_1(%arg0: i32, %arg1: i32, %arg2: i32) -> (i32, i32) {
    %c0_i32 = arith.constant 0 : i32
    return %arg1, %arg2 : i32, i32
  }
  func.func @transform_2(%arg0: i32, %arg1: i32, %arg2: i32) -> (i32, i32) {
    %c0_i32 = arith.constant 0 : i32
    %c0_i32_0 = arith.constant 0 : i32
    return %c0_i32, %arg1 : i32, i32
  }
  func.func @transform_3(%arg0: i32, %arg1: i32, %arg2: i32) -> (i32, i32) {
    %c0_i32 = arith.constant 0 : i32
    %c0_i32_0 = arith.constant 0 : i32
    %c0_i32_1 = arith.constant 0 : i32
    return %c0_i32, %c0_i32_0 : i32, i32
  }
  func.func @transform_4(%arg0: i32, %arg1: i32, %arg2: i32) -> (i32, i32) {
    %c0_i32 = arith.constant 0 : i32
    %c0_i32_0 = arith.constant 0 : i32
    return %arg1, %c0_i32 : i32, i32
  }
  func.func @transform_5(%arg0: i32, %arg1: i32, %arg2: i32) -> (i32, i32) {
    %c0_i32 = arith.constant 0 : i32
    return %arg0, %arg1 : i32, i32
  }
}

</mosaic_0001>

<llo_original>
// kernel: tpu_custom_call.1
$region0: #{tpu_custom_call.1}
  #allocation0 [shape = 'u32[]', space=smem, size = 0x4, offset = 0x4, fixed_abs, tag = 'smem constant byte address 0x4 - core index']
  #allocation1 [shape = 'u32[144,128]{1,0:T(1,128)}', space=vmem, size = 0x12000, scoped, tag = 'internal scratch']
  #allocation2 [shape = 'f32[16,128]{1,0:T(8,128)}', space=vmem, size = 0x2000, scoped, tag = 'scratch operand']
  #allocation3 [shape = 'f32[16,128]{1,0:T(8,128)}', space=vmem, size = 0x2000, scoped, tag = 'scratch operand']
  %s0 = inlined_call_operand.hbm [shape: f32[16,128], index: 0, kind: input, shape index: {}]
  %s1 = inlined_call_operand.hbm [shape: f32[128,128], index: 1, kind: input, shape index: {}]
  %s2 = inlined_call_operand.vmem [shape: f32[1,128], index: 2, kind: input, shape index: {}]
  %s3 = inlined_call_operand.hbm [shape: f32[128,128], index: 3, kind: input, shape index: {}]
  %s4 = inlined_call_operand.hbm [shape: f32[128,128], index: 4, kind: input, shape index: {}]
  %s5 = inlined_call_operand.hbm [shape: f32[16,128], index: 5, kind: output, shape index: {}]
  %s6 = sld [smem:[#allocation0]]
  $region58: #{tpu_custom_call.1} parent=0
    _
  %s8 = ssub.s32 1, %s6
  %s9 = scalar_select 0, %s8, %s6
  $region1: #{tpu_custom_call.1} parent=0
    #allocation4 [shape = 'u8[8192]{0}', space=vmem, size = 0x2000, scoped, tag = 'input window, operand 0, single buffered']
    #allocation5 [shape = 's32[1]{0}', space=sflag, size = 0x4, scoped, tag = 'scoped memory for tpu_custom_call.1']
    #allocation6 [shape = 's32[1]{0}', space=sflag, size = 0x4, scoped, tag = 'scoped memory for tpu_custom_call.1']
    #allocation7 [shape = 'u8[65536]{0}', space=vmem, size = 0x10000, scoped, tag = 'input window, operand 1, single buffered']
    #allocation8 [shape = 's32[1]{0}', space=sflag, size = 0x4, scoped, tag = 'scoped memory for tpu_custom_call.1']
    #allocation9 [shape = 'u8[65536]{0}', space=vmem, size = 0x10000, scoped, tag = 'input window, operand 3, single buffered']
    #allocation10 [shape = 'u8[65536]{0}', space=vmem, size = 0x10000, scoped, tag = 'input window, operand 4, single buffered']
    #allocation11 [shape = 's32[1]{0}', space=sflag, size = 0x4, scoped, tag = 'scoped memory for tpu_custom_call.1']
    #allocation12 [shape = 'u8[8192]{0}', space=vmem, size = 0x2000, scoped, tag = 'output window, operand 0, single buffered']
    %10 = vsyncpa [#allocation5], 0
    %11 = vsyncpa [#allocation8], 0
    %12 = vsyncpa [#allocation11], 0
    %13 = vsyncpa [#allocation6], 0
    // Predicated region
    $region2: #{tpu_custom_call.1} parent=1 // pred_check
      _
    $region3: #{tpu_custom_call.1} parent=1 // pred_check_branch
      %15 = sbr.rel (0) target = $region5
    $region4: #{tpu_custom_call.1} parent=1 // pred_region
      %s17 = ssub.s32 256, 256
      %18 = vsyncadd [#allocation5], %s17
      %s19 = sshll.u32 [#allocation4], 4
      %s20 = int_to_ptr.vmem [resolvable:$true] %s19
      %25 = dma.hbm_to_vmem [thread:$0]  %s0, 256, %s20, [#allocation5], 128, 128, 8
    $region5: #{tpu_custom_call.1} parent=1 // pred_fallthru
      _
    // Predicated region
    $region6: #{tpu_custom_call.1} parent=1 // pred_check
      _
    $region7: #{tpu_custom_call.1} parent=1 // pred_check_branch
      %27 = sbr.rel (0) target = $region9
    $region8: #{tpu_custom_call.1} parent=1 // pred_region
      %s29 = ssub.s32 2048, 2048
      %30 = vsyncadd [#allocation8], %s29
      %s31 = sshll.u32 [#allocation7], 4
      %s32 = int_to_ptr.vmem [resolvable:$true] %s31
      %37 = dma.hbm_to_vmem [thread:$0]  %s1, 2048, %s32, [#allocation8], 128, 128, 8
    $region9: #{tpu_custom_call.1} parent=1 // pred_fallthru
      _
    // Predicated region
    $region10: #{tpu_custom_call.1} parent=1 // pred_check
      _
    $region11: #{tpu_custom_call.1} parent=1 // pred_check_branch
      %39 = sbr.rel (0) target = $region13
    $region12: #{tpu_custom_call.1} parent=1 // pred_region
      _
    $region13: #{tpu_custom_call.1} parent=1 // pred_fallthru
      _
    // Predicated region
    $region14: #{tpu_custom_call.1} parent=1 // pred_check
      _
    $region15: #{tpu_custom_call.1} parent=1 // pred_check_branch
      %41 = sbr.rel (0) target = $region17
    $region16: #{tpu_custom_call.1} parent=1 // pred_region
      %s43 = ssub.s32 2048, 2048
      %44 = vsyncadd [#allocation8], %s43
      %s45 = sshll.u32 [#allocation9], 4
      %s46 = int_to_ptr.vmem [resolvable:$true] %s45
      %51 = dma.hbm_to_vmem [thread:$0]  %s3, 2048, %s46, [#allocation8], 128, 128, 8
    $region17: #{tpu_custom_call.1} parent=1 // pred_fallthru
      _
    // Predicated region
    $region18: #{tpu_custom_call.1} parent=1 // pred_check
      _
    $region19: #{tpu_custom_call.1} parent=1 // pred_check_branch
      %53 = sbr.rel (0) target = $region21
    $region20: #{tpu_custom_call.1} parent=1 // pred_region
      %s55 = ssub.s32 2048, 2048
      %56 = vsyncadd [#allocation11], %s55
      %s57 = sshll.u32 [#allocation10], 4
      %s58 = int_to_ptr.vmem [resolvable:$true] %s57
      %63 = dma.hbm_to_vmem [thread:$0]  %s4, 2048, %s58, [#allocation11], 128, 128, 8
    $region21: #{tpu_custom_call.1} parent=1 // pred_fallthru
      _
    // Predicated region
    $region22: #{tpu_custom_call.1} parent=1 // pred_check
      _
    $region23: #{tpu_custom_call.1} parent=1 // pred_check_branch
      %65 = sbr.rel (0) target = $region25
    $region24: #{tpu_custom_call.1} parent=1 // pred_region
      %66 = dma.done [#allocation5], 256
    $region25: #{tpu_custom_call.1} parent=1 // pred_fallthru
      _
    // Predicated region
    $region26: #{tpu_custom_call.1} parent=1 // pred_check
      _
    $region27: #{tpu_custom_call.1} parent=1 // pred_check_branch
      %68 = sbr.rel (0) target = $region29
    $region28: #{tpu_custom_call.1} parent=1 // pred_region
      %69 = dma.done [#allocation8], 2048
    $region29: #{tpu_custom_call.1} parent=1 // pred_fallthru
      _
    // Predicated region
    $region30: #{tpu_custom_call.1} parent=1 // pred_check
      _
    $region31: #{tpu_custom_call.1} parent=1 // pred_check_branch
      %71 = sbr.rel (0) target = $region33
    $region32: #{tpu_custom_call.1} parent=1 // pred_region
      %72 = dma.done [#allocation8], 2048
    $region33: #{tpu_custom_call.1} parent=1 // pred_fallthru
      _
    // Predicated region
    $region34: #{tpu_custom_call.1} parent=1 // pred_check
      _
    $region35: #{tpu_custom_call.1} parent=1 // pred_check_branch
      %74 = sbr.rel (0) target = $region37
    $region36: #{tpu_custom_call.1} parent=1 // pred_region
      %75 = dma.done [#allocation11], 2048
    $region37: #{tpu_custom_call.1} parent=1 // pred_fallthru
      _
    %p76 = scmp.eq.s32.totalorder 0, 0
    // Predicated region
    $region38: #{tpu_custom_call.1} parent=1 // pred_check
      %p77 = pneg %p76
    $region39: #{tpu_custom_call.1} parent=1 // pred_check_branch
      %79 = sbr.rel (%p77) target = $region41
    $region40: #{tpu_custom_call.1} parent=1 // pred_region
      %80 = vst [vmem:[#allocation2] sm:$0xff] 0.0
      %81 = vst [vmem:[#allocation2 + $0x8] sm:$0xff] 0.0
    $region41: #{tpu_custom_call.1} parent=1 // pred_fallthru
      _
    %v82 = vld [vmem:[#allocation4] sm:$0xff]
    %v83 = vld [vmem:[#allocation4 + $0x8] sm:$0xff]
    %v84 = vld [vmem:[#allocation2] sm:$0xff]
    %v85 = vld [vmem:[#allocation2 + $0x8] sm:$0xff]
    %v86 = vld [vmem:[#allocation7] sm:$0xff]
    %v87 = vld [vmem:[#allocation7 + $0x8] sm:$0xff]
    %v88 = vld [vmem:[#allocation7 + $0x10] sm:$0xff]
    %v89 = vld [vmem:[#allocation7 + $0x18] sm:$0xff]
    %v90 = vld [vmem:[#allocation7 + $0x20] sm:$0xff]
    %v91 = vld [vmem:[#allocation7 + $0x28] sm:$0xff]
    %v92 = vld [vmem:[#allocation7 + $0x30] sm:$0xff]
    %v93 = vld [vmem:[#allocation7 + $0x38] sm:$0xff]
    %v94 = vld [vmem:[#allocation7 + $0x40] sm:$0xff]
    %v95 = vld [vmem:[#allocation7 + $0x48] sm:$0xff]
    %v96 = vld [vmem:[#allocation7 + $0x50] sm:$0xff]
    %v97 = vld [vmem:[#allocation7 + $0x58] sm:$0xff]
    %v98 = vld [vmem:[#allocation7 + $0x60] sm:$0xff]
    %v99 = vld [vmem:[#allocation7 + $0x68] sm:$0xff]
    %v100 = vld [vmem:[#allocation7 + $0x70] sm:$0xff]
    %v101 = vld [vmem:[#allocation7 + $0x78] sm:$0xff]
    %102 = vmatprep.subr.mxu0 0.0
    %103 = vmatpush1.xpose.msra.mxu0 %v101
    %104 = vmatprep.subr.mxu0 0.0
    %105 = vmatpush1.xpose.msra.mxu0 %v100
    %106 = vmatprep.subr.mxu0 0.0
    %107 = vmatpush1.xpose.msra.mxu0 %v99
    %108 = vmatprep.subr.mxu0 0.0
    %109 = vmatpush1.xpose.msra.mxu0 %v98
    %110 = vmatprep.subr.mxu0 0.0
    %111 = vmatpush1.xpose.msra.mxu0 %v97
    %112 = vmatprep.subr.mxu0 0.0
    %113 = vmatpush1.xpose.msra.mxu0 %v96
    %114 = vmatprep.subr.mxu0 0.0
    %115 = vmatpush1.xpose.msra.mxu0 %v95
    %116 = vmatprep.subr.mxu0 0.0
    %117 = vmatpush1.xpose.msra.mxu0 %v94
    %118 = vmatprep.subr.mxu0 0.0
    %119 = vmatpush1.xpose.msra.mxu0 %v93
    %120 = vmatprep.subr.mxu0 0.0
    %121 = vmatpush1.xpose.msra.mxu0 %v92
    %122 = vmatprep.subr.mxu0 0.0
    %123 = vmatpush1.xpose.msra.mxu0 %v91
    %124 = vmatprep.subr.mxu0 0.0
    %125 = vmatpush1.xpose.msra.mxu0 %v90
    %126 = vmatprep.subr.mxu0 0.0
    %127 = vmatpush1.xpose.msra.mxu0 %v89
    %128 = vmatprep.subr.mxu0 0.0
    %129 = vmatpush1.xpose.msra.mxu0 %v88
    %130 = vmatprep.subr.mxu0 0.0
    %131 = vmatpush1.xpose.msra.mxu0 %v87
    %132 = vmatprep.subr.mxu0 0.0
    %133 = vmatpush1.xpose.msra.mxu0 %v86
    %134 = vmatprep.subr.mxu0 0.0
    %135 = vmatpush2.xpose.msra.mxu0 0.0
    %136 = vmatprep.subr.mxu0 0.0
    %137 = vmatpush2.xpose.msra.mxu0 0.0
    %138 = vmatprep.subr.mxu0 0.0
    %139 = vmatpush2.xpose.msra.mxu0 0.0
    %140 = vmatprep.subr.mxu0 0.0
    %141 = vmatpush2.xpose.msra.mxu0 0.0
    %142 = vmatprep.subr.mxu0 0.0
    %143 = vmatpush2.xpose.msra.mxu0 0.0
    %144 = vmatprep.subr.mxu0 0.0
    %145 = vmatpush2.xpose.msra.mxu0 0.0
    %146 = vmatprep.subr.mxu0 0.0
    %147 = vmatpush2.xpose.msra.mxu0 0.0
    %148 = vmatprep.subr.mxu0 0.0
    %149 = vmatpush2.xpose.msra.mxu0 0.0
    %150 = vmatprep.subr.mxu0 0.0
    %151 = vmatpush2.xpose.msra.mxu0 0.0
    %152 = vmatprep.subr.mxu0 0.0
    %153 = vmatpush2.xpose.msra.mxu0 0.0
    %154 = vmatprep.subr.mxu0 0.0
    %155 = vmatpush2.xpose.msra.mxu0 0.0
    %156 = vmatprep.subr.mxu0 0.0
    %157 = vmatpush2.xpose.msra.mxu0 0.0
    %158 = vmatprep.subr.mxu0 0.0
    %159 = vmatpush2.xpose.msra.mxu0 0.0
    %160 = vmatprep.subr.mxu0 0.0
    %161 = vmatpush2.xpose.msra.mxu0 0.0
    %162 = vmatprep.subr.mxu0 0.0
    %163 = vmatpush2.xpose.msra.mxu0 0.0
    %164 = vmatprep.subr.mxu0 0.0
    %165 = vmatpush2.xpose.msra.mxu0 0.0
    %166 = vmatprep.mubr.f32.mxu0 0.0
    %167 = vmatmul.mubr.f32.gmra.mxu0 %v82
    %v168 = vpop.f32.mrf.mxu0
    %v169 = vadd.f32 0.0, %v168
    %v170 = vpop.f32.mrf.mxu0
    %171 = vmatprep.mubr.f32.mxu0 0.0
    %172 = vmatmul.mubr.f32.gmra.mxu0 %v83
    %v173 = vpop.f32.mrf.mxu0
    %v174 = vadd.f32 0.0, %v173
    %v175 = vpop.f32.mrf.mxu0
    %176 = vdwg.mxu0
    %v177 = vadd.f32 %v84, %v169
    %v178 = vadd.f32 %v85, %v174
    %179 = vst [vmem:[#allocation2] sm:$0xff] %v177
    %180 = vst [vmem:[#allocation2 + $0x8] sm:$0xff] %v178
    %s181 = smul.u32 0, 128
    // Predicated region
    $region42: #{tpu_custom_call.1} parent=1 // pred_check
      %p182 = pneg %p76
    $region43: #{tpu_custom_call.1} parent=1 // pred_check_branch
      %184 = sbr.rel (%p182) target = $region45
    $region44: #{tpu_custom_call.1} parent=1 // pred_region
      %185 = vst [vmem:[#allocation3] sm:$0xff] 0.0
      %186 = vst [vmem:[#allocation3 + $0x8] sm:$0xff] 0.0
    $region45: #{tpu_custom_call.1} parent=1 // pred_fallthru
      _
    %s187 = sshra.s32 %s181, 7
    %s188 = sand.u32 %s181, 127
    %s189 = scalar_lea.vmem [#allocation9], %s187
    %v190 = vld [vmem:[%s189] sm:$0xff]
    %v191 = vld [vmem:[%s189 + $0x8] sm:$0xff]
    %v192 = vld [vmem:[%s189 + $0x10] sm:$0xff]
    %v193 = vld [vmem:[%s189 + $0x18] sm:$0xff]
    %v194 = vld [vmem:[%s189 + $0x20] sm:$0xff]
    %v195 = vld [vmem:[%s189 + $0x28] sm:$0xff]
    %v196 = vld [vmem:[%s189 + $0x30] sm:$0xff]
    %v197 = vld [vmem:[%s189 + $0x38] sm:$0xff]
    %v198 = vld [vmem:[%s189 + $0x40] sm:$0xff]
    %v199 = vld [vmem:[%s189 + $0x48] sm:$0xff]
    %v200 = vld [vmem:[%s189 + $0x50] sm:$0xff]
    %v201 = vld [vmem:[%s189 + $0x58] sm:$0xff]
    %v202 = vld [vmem:[%s189 + $0x60] sm:$0xff]
    %v203 = vld [vmem:[%s189 + $0x68] sm:$0xff]
    %v204 = vld [vmem:[%s189 + $0x70] sm:$0xff]
    %v205 = vld [vmem:[%s189 + $0x78] sm:$0xff]
    %v206 = vld [vmem:[#allocation3] sm:$0xff]
    %v207 = vld [vmem:[#allocation3 + $0x8] sm:$0xff]
    %208 = vmatprep.subr.mxu0 0.0
    %209 = vmatpush1.xpose.msra.mxu0 %v205
    %210 = vmatprep.subr.mxu0 0.0
    %211 = vmatpush1.xpose.msra.mxu0 %v204
    %212 = vmatprep.subr.mxu0 0.0
    %213 = vmatpush1.xpose.msra.mxu0 %v203
    %214 = vmatprep.subr.mxu0 0.0
    %215 = vmatpush1.xpose.msra.mxu0 %v202
    %216 = vmatprep.subr.mxu0 0.0
    %217 = vmatpush1.xpose.msra.mxu0 %v201
    %218 = vmatprep.subr.mxu0 0.0
    %219 = vmatpush1.xpose.msra.mxu0 %v200
    %220 = vmatprep.subr.mxu0 0.0
    %221 = vmatpush1.xpose.msra.mxu0 %v199
    %222 = vmatprep.subr.mxu0 0.0
    %223 = vmatpush1.xpose.msra.mxu0 %v198
    %224 = vmatprep.subr.mxu0 0.0
    %225 = vmatpush1.xpose.msra.mxu0 %v197
    %226 = vmatprep.subr.mxu0 0.0
    %227 = vmatpush1.xpose.msra.mxu0 %v196
    %228 = vmatprep.subr.mxu0 0.0
    %229 = vmatpush1.xpose.msra.mxu0 %v195
    %230 = vmatprep.subr.mxu0 0.0
    %231 = vmatpush1.xpose.msra.mxu0 %v194
    %232 = vmatprep.subr.mxu0 0.0
    %233 = vmatpush1.xpose.msra.mxu0 %v193
    %234 = vmatprep.subr.mxu0 0.0
    %235 = vmatpush1.xpose.msra.mxu0 %v192
    %236 = vmatprep.subr.mxu0 0.0
    %237 = vmatpush1.xpose.msra.mxu0 %v191
    %238 = vmatprep.subr.mxu0 0.0
    %239 = vmatpush1.xpose.msra.mxu0 %v190
    %240 = vmatprep.subr.mxu0 0.0
    %241 = vmatpush2.xpose.msra.mxu0 0.0
    %242 = vmatprep.subr.mxu0 0.0
    %243 = vmatpush2.xpose.msra.mxu0 0.0
    %244 = vmatprep.subr.mxu0 0.0
    %245 = vmatpush2.xpose.msra.mxu0 0.0
    %246 = vmatprep.subr.mxu0 0.0
    %247 = vmatpush2.xpose.msra.mxu0 0.0
    %248 = vmatprep.subr.mxu0 0.0
    %249 = vmatpush2.xpose.msra.mxu0 0.0
    %250 = vmatprep.subr.mxu0 0.0
    %251 = vmatpush2.xpose.msra.mxu0 0.0
    %252 = vmatprep.subr.mxu0 0.0
    %253 = vmatpush2.xpose.msra.mxu0 0.0
    %254 = vmatprep.subr.mxu0 0.0
    %255 = vmatpush2.xpose.msra.mxu0 0.0
    %256 = vmatprep.subr.mxu0 0.0
    %257 = vmatpush2.xpose.msra.mxu0 0.0
    %258 = vmatprep.subr.mxu0 0.0
    %259 = vmatpush2.xpose.msra.mxu0 0.0
    %260 = vmatprep.subr.mxu0 0.0
    %261 = vmatpush2.xpose.msra.mxu0 0.0
    %262 = vmatprep.subr.mxu0 0.0
    %263 = vmatpush2.xpose.msra.mxu0 0.0
    %264 = vmatprep.subr.mxu0 0.0
    %265 = vmatpush2.xpose.msra.mxu0 0.0
    %266 = vmatprep.subr.mxu0 0.0
    %267 = vmatpush2.xpose.msra.mxu0 0.0
    %268 = vmatprep.subr.mxu0 0.0
    %269 = vmatpush2.xpose.msra.mxu0 0.0
    %270 = vmatprep.subr.mxu0 0.0
    %271 = vmatpush2.xpose.msra.mxu0 0.0
    %272 = vmatprep.mubr.f32.mxu0 0.0
    %273 = vmatmul.mubr.f32.gmra.mxu0 %v82
    %v274 = vpop.f32.mrf.mxu0
    %v275 = vadd.f32 0.0, %v274
    %v276 = vpop.f32.mrf.mxu0
    %277 = vmatprep.mubr.f32.mxu0 0.0
    %278 = vmatmul.mubr.f32.gmra.mxu0 %v83
    %v279 = vpop.f32.mrf.mxu0
    %v280 = vadd.f32 0.0, %v279
    %v281 = vpop.f32.mrf.mxu0
    %282 = vdwg.mxu0
    %v283 = vadd.f32 %v206, %v275
    %v284 = vadd.f32 %v207, %v280
    %285 = vst [vmem:[#allocation3] sm:$0xff] %v283
    %286 = vst [vmem:[#allocation3 + $0x8] sm:$0xff] %v284
    // Predicated region
    $region46: #{tpu_custom_call.1} parent=1 // pred_check
      %p287 = pneg %p76
    $region47: #{tpu_custom_call.1} parent=1 // pred_check_branch
      %289 = sbr.rel (%p287) target = $region49
    $region48: #{tpu_custom_call.1} parent=1 // pred_region
      %v290 = vld [vmem:[#allocation3] sm:$0xff]
      %v291 = vld [vmem:[#allocation3 + $0x8] sm:$0xff]
      %v292 = vmul.f32 %v290, 2.0
      %v293 = vmul.f32 %v291, 2.0
      %v294 = vld [vmem:[#allocation10] sm:$0xff]
      %v295 = vld [vmem:[#allocation10 + $0x8] sm:$0xff]
      %v296 = vld [vmem:[#allocation10 + $0x10] sm:$0xff]
      %v297 = vld [vmem:[#allocation10 + $0x18] sm:$0xff]
      %v298 = vld [vmem:[#allocation10 + $0x20] sm:$0xff]
      %v299 = vld [vmem:[#allocation10 + $0x28] sm:$0xff]
      %v300 = vld [vmem:[#allocation10 + $0x30] sm:$0xff]
      %v301 = vld [vmem:[#allocation10 + $0x38] sm:$0xff]
      %v302 = vld [vmem:[#allocation10 + $0x40] sm:$0xff]
      %v303 = vld [vmem:[#allocation10 + $0x48] sm:$0xff]
      %v304 = vld [vmem:[#allocation10 + $0x50] sm:$0xff]
      %v305 = vld [vmem:[#allocation10 + $0x58] sm:$0xff]
      %v306 = vld [vmem:[#allocation10 + $0x60] sm:$0xff]
      %v307 = vld [vmem:[#allocation10 + $0x68] sm:$0xff]
      %v308 = vld [vmem:[#allocation10 + $0x70] sm:$0xff]
      %v309 = vld [vmem:[#allocation10 + $0x78] sm:$0xff]
      %310 = vmatprep.subr.mxu0 0.0
      %311 = vmatpush1.xpose.msra.mxu0 %v309
      %312 = vmatprep.subr.mxu0 0.0
      %313 = vmatpush1.xpose.msra.mxu0 %v308
      %314 = vmatprep.subr.mxu0 0.0
      %315 = vmatpush1.xpose.msra.mxu0 %v307
      %316 = vmatprep.subr.mxu0 0.0
      %317 = vmatpush1.xpose.msra.mxu0 %v306
      %318 = vmatprep.subr.mxu0 0.0
      %319 = vmatpush1.xpose.msra.mxu0 %v305
      %320 = vmatprep.subr.mxu0 0.0
      %321 = vmatpush1.xpose.msra.mxu0 %v304
      %322 = vmatprep.subr.mxu0 0.0
      %323 = vmatpush1.xpose.msra.mxu0 %v303
      %324 = vmatprep.subr.mxu0 0.0
      %325 = vmatpush1.xpose.msra.mxu0 %v302
      %326 = vmatprep.subr.mxu0 0.0
      %327 = vmatpush1.xpose.msra.mxu0 %v301
      %328 = vmatprep.subr.mxu0 0.0
      %329 = vmatpush1.xpose.msra.mxu0 %v300
      %330 = vmatprep.subr.mxu0 0.0
      %331 = vmatpush1.xpose.msra.mxu0 %v299
      %332 = vmatprep.subr.mxu0 0.0
      %333 = vmatpush1.xpose.msra.mxu0 %v298
      %334 = vmatprep.subr.mxu0 0.0
      %335 = vmatpush1.xpose.msra.mxu0 %v297
      %336 = vmatprep.subr.mxu0 0.0
      %337 = vmatpush1.xpose.msra.mxu0 %v296
      %338 = vmatprep.subr.mxu0 0.0
      %339 = vmatpush1.xpose.msra.mxu0 %v295
      %340 = vmatprep.subr.mxu0 0.0
      %341 = vmatpush1.xpose.msra.mxu0 %v294
      %342 = vmatprep.subr.mxu0 0.0
      %343 = vmatpush2.xpose.msra.mxu0 0.0
      %344 = vmatprep.subr.mxu0 0.0
      %345 = vmatpush2.xpose.msra.mxu0 0.0
      %346 = vmatprep.subr.mxu0 0.0
      %347 = vmatpush2.xpose.msra.mxu0 0.0
      %348 = vmatprep.subr.mxu0 0.0
      %349 = vmatpush2.xpose.msra.mxu0 0.0
      %350 = vmatprep.subr.mxu0 0.0
      %351 = vmatpush2.xpose.msra.mxu0 0.0
      %352 = vmatprep.subr.mxu0 0.0
      %353 = vmatpush2.xpose.msra.mxu0 0.0
      %354 = vmatprep.subr.mxu0 0.0
      %355 = vmatpush2.xpose.msra.mxu0 0.0
      %356 = vmatprep.subr.mxu0 0.0
      %357 = vmatpush2.xpose.msra.mxu0 0.0
      %358 = vmatprep.subr.mxu0 0.0
      %359 = vmatpush2.xpose.msra.mxu0 0.0
      %360 = vmatprep.subr.mxu0 0.0
      %361 = vmatpush2.xpose.msra.mxu0 0.0
      %362 = vmatprep.subr.mxu0 0.0
      %363 = vmatpush2.xpose.msra.mxu0 0.0
      %364 = vmatprep.subr.mxu0 0.0
      %365 = vmatpush2.xpose.msra.mxu0 0.0
      %366 = vmatprep.subr.mxu0 0.0
      %367 = vmatpush2.xpose.msra.mxu0 0.0
      %368 = vmatprep.subr.mxu0 0.0
      %369 = vmatpush2.xpose.msra.mxu0 0.0
      %370 = vmatprep.subr.mxu0 0.0
      %371 = vmatpush2.xpose.msra.mxu0 0.0
      %372 = vmatprep.subr.mxu0 0.0
      %373 = vmatpush2.xpose.msra.mxu0 0.0
      %374 = vmatprep.mubr.f32.mxu0 0.0
      %375 = vmatmul.mubr.f32.gmra.mxu0 %v292
      %v376 = vpop.f32.mrf.mxu0
      %v377 = vadd.f32 0.0, %v376
      %v378 = vpop.f32.mrf.mxu0
      %379 = vmatprep.mubr.f32.mxu0 0.0
      %380 = vmatmul.mubr.f32.gmra.mxu0 %v293
      %v381 = vpop.f32.mrf.mxu0
      %v382 = vadd.f32 0.0, %v381
      %v383 = vpop.f32.mrf.mxu0
      %384 = vdwg.mxu0
      %v385 = vld [vmem:[#allocation2] sm:$0xff]
      %v386 = vld [vmem:[#allocation2 + $0x8] sm:$0xff]
      %v387 = vld [vmem:[%s2] sm:$0x1]
      %v389 = vlaneseq
      %v390 = vshrl.u32 %v389, 7
      %v391 = vsub.s32 0, %v390
      %v392 = vrot.slane %v387, %v391
      %v394 = vadd.f32 %v385, %v392
      %v395 = vadd.f32 %v386, %v392
      %v396 = vadd.f32 %v394, %v377
      %v397 = vadd.f32 %v395, %v382
      %398 = vst [vmem:[#allocation12] sm:$0xff] %v396
      %399 = vst [vmem:[#allocation12 + $0x8] sm:$0xff] %v397
    $region49: #{tpu_custom_call.1} parent=1 // pred_fallthru
      _
    // Predicated region
    $region50: #{tpu_custom_call.1} parent=1 // pred_check
      _
    $region51: #{tpu_custom_call.1} parent=1 // pred_check_branch
      %401 = sbr.rel (0) target = $region53
    $region52: #{tpu_custom_call.1} parent=1 // pred_region
      %s403 = ssub.s32 256, 256
      %404 = vsyncadd [#allocation6], %s403
      %s405 = sshll.u32 [#allocation12], 4
      %s406 = int_to_ptr.vmem [resolvable:$true] %s405
      %411 = dma.vmem_to_hbm [thread:$0]  %s406, 256, %s5, [#allocation6], 128, 128, 8
    $region53: #{tpu_custom_call.1} parent=1 // pred_fallthru
      _
    // Predicated region
    $region54: #{tpu_custom_call.1} parent=1 // pred_check
      _
    $region55: #{tpu_custom_call.1} parent=1 // pred_check_branch
      %413 = sbr.rel (0) target = $region57
    $region56: #{tpu_custom_call.1} parent=1 // pred_region
      %414 = dma.done [#allocation6], 256
    $region57: #{tpu_custom_call.1} parent=1 // pred_fallthru
      _
    %415 = vsyncpa [#allocation5], 1
    %416 = vsyncpa [#allocation8], 1
    %417 = vsyncpa [#allocation11], 1
    %418 = vsyncpa [#allocation6], 1

</llo_original>
